<compile_context>
chip_gen: v7x
topology: tpu7x:2x2x1
jax: 0.10.0
libtpu: 0.0.40
codegen_flags: <defaults>
</compile_context>

<pallas_src>
import functools

import jax
import jax.numpy as jnp
from jax.experimental import pallas as pl
from jax.experimental.pallas import tpu as pltpu

EPS = 1e-5


# ----------------------------------------------------------------------------
# Kernel
# ----------------------------------------------------------------------------
def _rain_kernel(params_ref, x_ref, mask_ref, o_ref, *, H, W):
    """One grid step: TC channels of one batch element, full flattened plane.

    params_ref: VMEM (TC, 8) f32 -> cols: fg_g, fg_b, bg_g, bg_b, ref_g, ref_b, 0, 0
    x_ref, o_ref: VMEM (TC, H*W)
    mask_ref:     VMEM (1, H*W)   (shared across the channel tile)
    """
    HW = H * W
    has_ext = W > H  # static (closure) -> branch resolved at trace time

    x = x_ref[...].astype(jnp.float32)        # (TC, HW)
    m = mask_ref[...].astype(jnp.float32)     # (1, HW)
    p = params_ref[...].astype(jnp.float32)   # (TC, 8)
    fg_g = p[:, 0:1]
    fg_b = p[:, 1:2]
    bg_g = p[:, 2:3]
    bg_b = p[:, 3:4]

    x2 = x * x

    if has_ext:
        # internal region = columns [0, H) of each row of the original (H, W) plane
        col = jax.lax.broadcasted_iota(jnp.int32, (1, HW), 1) % W
        is_int = (col < H).astype(jnp.float32)   # (1, HW)
        m_fg = m * is_int
        n_int = float(H * H)
    else:
        is_int = None
        m_fg = m
        n_int = float(HW)

    # --- single reduction pass ------------------------------------------------
    s1_fg = jnp.sum(x * m_fg, axis=-1, keepdims=True)     # (TC, 1)
    s2_fg = jnp.sum(x2 * m_fg, axis=-1, keepdims=True)
    n_fg = jnp.sum(m_fg, axis=-1, keepdims=True)           # (1, 1)

    s1_all = jnp.sum(x, axis=-1, keepdims=True)
    s2_all = jnp.sum(x2, axis=-1, keepdims=True)
    if has_ext:
        s1_int = jnp.sum(x * is_int, axis=-1, keepdims=True)
        s2_int = jnp.sum(x2 * is_int, axis=-1, keepdims=True)
        s1_ext = s1_all - s1_int
        s2_ext = s2_all - s2_int
    else:
        s1_int = s1_all
        s2_int = s2_all

    s1_bg = s1_int - s1_fg
    s2_bg = s2_int - s2_fg
    n_bg = n_int - n_fg

    def _mean_std(s1, s2, n):
        inv_n = 1.0 / (n + EPS)                 # PyTorch keeps eps in the denominator
        mean = s1 * inv_n
        # sum((x - mean)^2 over the region), expanded; exact for binary masks
        var = (s2 - 2.0 * mean * s1 + mean * mean * n) * inv_n
        var = jnp.maximum(var, 0.0)
        std = jnp.sqrt(var + EPS)
        return mean, std

    mean_b, std_b = _mean_std(s1_bg, s2_bg, n_bg)
    mean_f, std_f = _mean_std(s1_fg, s2_fg, n_fg)
    rstd_b = 1.0 / std_b                        # per-channel (TC,1) only -> cheap
    rstd_f = 1.0 / std_f

    # --- fused per-channel affine coefficients ---------------------------------
    a_bg = rstd_b * (1.0 + bg_g)
    b_bg = bg_b - mean_b * a_bg
    scale_f = rstd_f * std_b
    a_fg = scale_f * (1.0 + fg_g)
    b_fg = (mean_b - mean_f * scale_f) * (1.0 + fg_g) + fg_b

    if has_ext:
        rf_g = p[:, 4:5]
        rf_b = p[:, 5:6]
        n_ext = float(H * (W - H))
        mean_e, std_e = _mean_std(s1_ext, s2_ext, n_ext)
        a_ex = (1.0 + rf_g) / std_e
        b_ex = rf_b - mean_e * a_ex
        m_bg = is_int - m_fg
        m_ex = 1.0 - is_int
        A = m_fg * a_fg + m_bg * a_bg + m_ex * a_ex
        Bc = m_fg * b_fg + m_bg * b_bg + m_ex * b_ex
    else:
        m_bg = 1.0 - m_fg
        A = m_fg * a_fg + m_bg * a_bg
        Bc = m_fg * b_fg + m_bg * b_bg

    o_ref[...] = (x * A + Bc).astype(o_ref.dtype)


# ----------------------------------------------------------------------------
# Wrapper
# ----------------------------------------------------------------------------
def _nearest_interp_nchw(mask, out_h, out_w):
    """F.interpolate(mode='nearest') equivalent for NCHW tensors (glue, not kernel)."""
    _, _, h, w = mask.shape
    ri = (jnp.arange(out_h) * h // out_h).astype(jnp.int32)
    ci = (jnp.arange(out_w) * w // out_w).astype(jnp.int32)
    return mask[:, :, ri[:, None], ci[None, :]]


def _pick_channel_tile(B, C, HW, itemsize, budget_bytes=4 << 20):
    """Channel-tile size: multiple of 8 (or full C) dividing C, block <= budget."""
    if C % 8 != 0:
        return C  # block second-last dim must equal the full extent in this case
    divisors = [d for d in range(8, C + 1, 8) if C % d == 0]
    fitting = [d for d in divisors if d * HW * itemsize <= budget_bytes]
    tc = max(fitting) if fitting else min(divisors)
    # keep >= 2 grid steps when possible so both v7x TensorCores get work
    if B * (C // tc) < 2:
        smaller = [d for d in (fitting or divisors) if d < tc]
        if smaller:
            tc = max(smaller)
    return tc


@jax.jit
def rainv2_forward(x, mask, params):
    """x: (B, C, H, W); mask: (B, 1, Hm, Wm); params: dict of (C,) arrays."""
    B, C, H, W = x.shape
    HW = H * W
    mask = _nearest_interp_nchw(mask, H, W).astype(x.dtype)

    x3 = x.reshape(B, C, HW)
    mask3 = mask.reshape(B, 1, HW)

    zeros = jnp.zeros((C,), jnp.float32)
    pmat = jnp.stack(
        [
            params["fg_gamma"].astype(jnp.float32),
            params["fg_beta"].astype(jnp.float32),
            params["bg_gamma"].astype(jnp.float32),
            params["bg_beta"].astype(jnp.float32),
            params["ref_gamma"].astype(jnp.float32),
            params["ref_beta"].astype(jnp.float32),
            zeros,
            zeros,
        ],
        axis=-1,
    )  # (C, 8)

    tc = _pick_channel_tile(B, C, HW, x.dtype.itemsize)
    grid = (B, C // tc)

    out3 = pl.pallas_call(
        functools.partial(_rain_kernel, H=H, W=W),
        out_shape=jax.ShapeDtypeStruct((B, C, HW), x.dtype),
        grid=grid,
        in_specs=[
            pl.BlockSpec((tc, 8), lambda b, ct: (ct, 0)),
            pl.BlockSpec((None, tc, HW), lambda b, ct: (b, ct, 0)),
            pl.BlockSpec((None, 1, HW), lambda b, ct: (b, 0, 0)),
        ],
        out_specs=pl.BlockSpec((None, tc, HW), lambda b, ct: (b, ct, 0)),
        compiler_params=pltpu.CompilerParams(
            dimension_semantics=("parallel", "parallel"),
            vmem_limit_bytes=32 * 1024 * 1024,  # > v5e's 16 MiB default, safe on v7x
        ),
    )(pmat, x3, mask3)

    return out3.reshape(B, C, H, W)


# ----------------------------------------------------------------------------
# Pure-JAX reference (mirrors the PyTorch code) for correctness checking
# ----------------------------------------------------------------------------
def _ref_mean_std(region, mask):
    s = jnp.sum(region, axis=(2, 3))
    n = jnp.sum(mask, axis=(2, 3))
    mean = (s / (n + EPS))[:, :, None, None]
    var = jnp.sum((region + (1.0 - mask) * mean - mean) ** 2, axis=(2, 3)) / (n + EPS)
    return mean, jnp.sqrt(var[:, :, None, None] + EPS)


def rainv2_reference(x, mask, p):
    B, C, H, W = x.shape
    mask = _nearest_interp_nchw(mask, H, W).astype(x.dtype)
    fg_g = p["fg_gamma"][None, :, None, None]
    fg_b = p["fg_beta"][None, :, None, None]
    bg_g = p["bg_gamma"][None, :, None, None]
    bg_b = p["bg_beta"][None, :, None, None]
    rf_g = p["ref_gamma"][None, :, None, None]
    rf_b = p["ref_beta"][None, :, None, None]

    def fb(xx, mm):
        mean_back, std_back = _ref_mean_std(xx * (1 - mm), 1 - mm)
        normalized = (xx - mean_back) / std_back
        nb = (normalized * (1 + bg_g) + bg_b) * (1 - mm)
        mean_fore, std_fore = _ref_mean_std(xx * mm, mm)
        normalized = (xx - mean_fore) / std_fore * std_back + mean_back
        nf = (normalized * (1 + fg_g) + fg_b) * mm
        return nf + nb

    if W > H:
        x_inter, mask_inter = x[:, :, :, :H], mask[:, :, :, :H]
        x_external = x[:, :, :, H:]
        out_inter = fb(x_inter, mask_inter)
        ones = jnp.ones_like(x_external[:, :1])
        mean_r, std_r = _ref_mean_std(x_external, ones)
        out_ext = (x_external - mean_r) / std_r * (1 + rf_g) + rf_b
        return jnp.concatenate([out_inter, out_ext], axis=-1)
    return fb(x, mask)


# ----------------------------------------------------------------------------
if __name__ == "__main__":
    def make_params(key, C):
        names = ["fg_gamma", "fg_beta", "bg_gamma", "bg_beta", "ref_gamma", "ref_beta"]
        ks = jax.random.split(key, len(names))
        # zero-init in PyTorch; use small non-zero values so affine terms are exercised
        return {n: 0.1 * jax.random.normal(k, (C,), jnp.float32) for n, k in zip(names, ks)}

    def run_case(seed, B, C, H, W, tag):
        k1, k2, k3 = jax.random.split(jax.random.PRNGKey(seed), 3)
        x = jax.random.normal(k1, (B, C, H, W), jnp.float32)
        mask = (jax.random.uniform(k2, (B, 1, H // 2, W // 2)) > 0.5).astype(jnp.float32)
        params = make_params(k3, C)
        out = jax.block_until_ready(rainv2_forward(x, mask, params))
        ref = rainv2_reference(x, mask, params)
        assert out.shape == (B, C, H, W)
        assert jnp.allclose(out, ref, atol=2e-4, rtol=2e-4), f"{tag} mismatch"

    # Square plane (fb branch only), C not a multiple of 8 -> channel tile == C.
    run_case(0, B=2, C=4, H=16, W=16, tag="square")
    # Rectangular W = 2H (fb + reference branch), C=16 exercises channel tiling.
    run_case(1, B=2, C=16, H=16, W=32, tag="rect-2H")
    # Rectangular W = 24 (external width != H), matches the previous check shape.
    run_case(2, B=2, C=4, H=16, W=24, tag="rect-24")

    print("KERNEL_OK")
</pallas_src>

<mosaic_0001>
module attributes {stable_mosaic.version = 11 : i64} {
  func.func @_rain_kernel(%arg0: i32, %arg1: i32, %arg2: memref<4x8xf32, #tpu.memory_space<vmem>>, %arg3: memref<1x4x256xf32, #tpu.memory_space<vmem>>, %arg4: memref<1x1x256xf32, #tpu.memory_space<vmem>>, %arg5: memref<1x4x256xf32, #tpu.memory_space<vmem>>) attributes {dimension_semantics = [#tpu.dimension_semantics<parallel>, #tpu.dimension_semantics<parallel>], iteration_bounds = array<i64: 2, 1>, scalar_prefetch = 0 : i64, scratch_operands = 0 : i64, tpu.core_type = #tpu.core_type<tc>, window_params = [{transform_indices = @transform_0, window_bounds = array<i64: 4, 8>}, {transform_indices = @transform_1, window_bounds = array<i64: 1, 4, 256>}, {transform_indices = @transform_2, window_bounds = array<i64: 1, 1, 256>}, {transform_indices = @transform_3, window_bounds = array<i64: 1, 4, 256>}]} {
    %c0 = arith.constant 0 : index
    %c0_0 = arith.constant 0 : index
    %c0_1 = arith.constant 0 : index
    %0 = vector.load %arg3[%c0, %c0_0, %c0_1] : memref<1x4x256xf32, #tpu.memory_space<vmem>>, vector<1x4x256xf32>
    %1 = vector.shape_cast %0 : vector<1x4x256xf32> to vector<4x256xf32>
    %c0_2 = arith.constant 0 : index
    %c0_3 = arith.constant 0 : index
    %c0_4 = arith.constant 0 : index
    %2 = vector.load %arg4[%c0_2, %c0_3, %c0_4] : memref<1x1x256xf32, #tpu.memory_space<vmem>>, vector<1x1x256xf32>
    %3 = vector.shape_cast %2 : vector<1x1x256xf32> to vector<1x256xf32>
    %c0_5 = arith.constant 0 : index
    %c0_6 = arith.constant 0 : index
    %4 = vector.load %arg2[%c0_5, %c0_6] : memref<4x8xf32, #tpu.memory_space<vmem>>, vector<4x8xf32>
    %5 = vector.extract_strided_slice %4 {offsets = [0, 0], sizes = [4, 1], strides = [1, 1]} : vector<4x8xf32> to vector<4x1xf32>
    %6 = vector.extract_strided_slice %4 {offsets = [0, 1], sizes = [4, 1], strides = [1, 1]} : vector<4x8xf32> to vector<4x1xf32>
    %7 = vector.extract_strided_slice %4 {offsets = [0, 2], sizes = [4, 1], strides = [1, 1]} : vector<4x8xf32> to vector<4x1xf32>
    %8 = vector.extract_strided_slice %4 {offsets = [0, 3], sizes = [4, 1], strides = [1, 1]} : vector<4x8xf32> to vector<4x1xf32>
    %9 = arith.mulf %1, %1 : vector<4x256xf32>
    %10 = vector.broadcast %3 : vector<1x256xf32> to vector<4x256xf32>
    %11 = arith.mulf %1, %10 : vector<4x256xf32>
    %cst = arith.constant dense<0.000000e+00> : vector<4xf32>
    %12 = vector.multi_reduction <add>, %11, %cst [1] : vector<4x256xf32> to vector<4xf32>
    %13 = vector.shape_cast %12 : vector<4xf32> to vector<4x1xf32>
    %14 = vector.broadcast %3 : vector<1x256xf32> to vector<4x256xf32>
    %15 = arith.mulf %9, %14 : vector<4x256xf32>
    %cst_7 = arith.constant dense<0.000000e+00> : vector<4xf32>
    %16 = vector.multi_reduction <add>, %15, %cst_7 [1] : vector<4x256xf32> to vector<4xf32>
    %17 = vector.shape_cast %16 : vector<4xf32> to vector<4x1xf32>
    %cst_8 = arith.constant dense<0.000000e+00> : vector<1xf32>
    %18 = vector.multi_reduction <add>, %3, %cst_8 [1] : vector<1x256xf32> to vector<1xf32>
    %19 = vector.shape_cast %18 : vector<1xf32> to vector<1x1xf32>
    %cst_9 = arith.constant dense<0.000000e+00> : vector<4xf32>
    %20 = vector.multi_reduction <add>, %1, %cst_9 [1] : vector<4x256xf32> to vector<4xf32>
    %21 = vector.shape_cast %20 : vector<4xf32> to vector<4x1xf32>
    %cst_10 = arith.constant dense<0.000000e+00> : vector<4xf32>
    %22 = vector.multi_reduction <add>, %9, %cst_10 [1] : vector<4x256xf32> to vector<4xf32>
    %23 = vector.shape_cast %22 : vector<4xf32> to vector<4x1xf32>
    %24 = arith.subf %21, %13 : vector<4x1xf32>
    %25 = arith.subf %23, %17 : vector<4x1xf32>
    %cst_11 = arith.constant 2.560000e+02 : f32
    %26 = vector.broadcast %cst_11 : f32 to vector<1x1xf32>
    %27 = arith.subf %26, %19 : vector<1x1xf32>
    %cst_12 = arith.constant 9.99999974E-6 : f32
    %28 = vector.broadcast %cst_12 : f32 to vector<1x1xf32>
    %29 = arith.addf %27, %28 : vector<1x1xf32>
    %cst_13 = arith.constant 1.000000e+00 : f32
    %30 = vector.broadcast %cst_13 : f32 to vector<1x1xf32>
    %31 = arith.divf %30, %29 : vector<1x1xf32>
    %32 = vector.broadcast %31 : vector<1x1xf32> to vector<4x1xf32>
    %33 = arith.mulf %24, %32 : vector<4x1xf32>
    %cst_14 = arith.constant 2.000000e+00 : f32
    %34 = vector.broadcast %cst_14 : f32 to vector<4x1xf32>
    %35 = arith.mulf %34, %33 : vector<4x1xf32>
    %36 = arith.mulf %35, %24 : vector<4x1xf32>
    %37 = arith.subf %25, %36 : vector<4x1xf32>
    %38 = arith.mulf %33, %33 : vector<4x1xf32>
    %39 = vector.broadcast %27 : vector<1x1xf32> to vector<4x1xf32>
    %40 = arith.mulf %38, %39 : vector<4x1xf32>
    %41 = arith.addf %37, %40 : vector<4x1xf32>
    %42 = vector.broadcast %31 : vector<1x1xf32> to vector<4x1xf32>
    %43 = arith.mulf %41, %42 : vector<4x1xf32>
    %cst_15 = arith.constant 0.000000e+00 : f32
    %44 = vector.broadcast %cst_15 : f32 to vector<4x1xf32>
    %45 = arith.maximumf %43, %44 : vector<4x1xf32>
    %cst_16 = arith.constant 9.99999974E-6 : f32
    %46 = vector.broadcast %cst_16 : f32 to vector<4x1xf32>
    %47 = arith.addf %45, %46 : vector<4x1xf32>
    %48 = math.sqrt %47 : vector<4x1xf32>
    %cst_17 = arith.constant 9.99999974E-6 : f32
    %49 = vector.broadcast %cst_17 : f32 to vector<1x1xf32>
    %50 = arith.addf %19, %49 : vector<1x1xf32>
    %cst_18 = arith.constant 1.000000e+00 : f32
    %51 = vector.broadcast %cst_18 : f32 to vector<1x1xf32>
    %52 = arith.divf %51, %50 : vector<1x1xf32>
    %53 = vector.broadcast %52 : vector<1x1xf32> to vector<4x1xf32>
    %54 = arith.mulf %13, %53 : vector<4x1xf32>
    %cst_19 = arith.constant 2.000000e+00 : f32
    %55 = vector.broadcast %cst_19 : f32 to vector<4x1xf32>
    %56 = arith.mulf %55, %54 : vector<4x1xf32>
    %57 = arith.mulf %56, %13 : vector<4x1xf32>
    %58 = arith.subf %17, %57 : vector<4x1xf32>
    %59 = arith.mulf %54, %54 : vector<4x1xf32>
    %60 = vector.broadcast %19 : vector<1x1xf32> to vector<4x1xf32>
    %61 = arith.mulf %59, %60 : vector<4x1xf32>
    %62 = arith.addf %58, %61 : vector<4x1xf32>
    %63 = vector.broadcast %52 : vector<1x1xf32> to vector<4x1xf32>
    %64 = arith.mulf %62, %63 : vector<4x1xf32>
    %cst_20 = arith.constant 0.000000e+00 : f32
    %65 = vector.broadcast %cst_20 : f32 to vector<4x1xf32>
    %66 = arith.maximumf %64, %65 : vector<4x1xf32>
    %cst_21 = arith.constant 9.99999974E-6 : f32
    %67 = vector.broadcast %cst_21 : f32 to vector<4x1xf32>
    %68 = arith.addf %66, %67 : vector<4x1xf32>
    %69 = math.sqrt %68 : vector<4x1xf32>
    %cst_22 = arith.constant 1.000000e+00 : f32
    %70 = vector.broadcast %cst_22 : f32 to vector<4x1xf32>
    %71 = arith.divf %70, %48 : vector<4x1xf32>
    %cst_23 = arith.constant 1.000000e+00 : f32
    %72 = vector.broadcast %cst_23 : f32 to vector<4x1xf32>
    %73 = arith.divf %72, %69 : vector<4x1xf32>
    %cst_24 = arith.constant 1.000000e+00 : f32
    %74 = vector.broadcast %cst_24 : f32 to vector<4x1xf32>
    %75 = arith.addf %74, %7 : vector<4x1xf32>
    %76 = arith.mulf %71, %75 : vector<4x1xf32>
    %77 = arith.mulf %33, %76 : vector<4x1xf32>
    %78 = arith.subf %8, %77 : vector<4x1xf32>
    %79 = arith.mulf %73, %48 : vector<4x1xf32>
    %cst_25 = arith.constant 1.000000e+00 : f32
    %80 = vector.broadcast %cst_25 : f32 to vector<4x1xf32>
    %81 = arith.addf %80, %5 : vector<4x1xf32>
    %82 = arith.mulf %79, %81 : vector<4x1xf32>
    %83 = arith.mulf %54, %79 : vector<4x1xf32>
    %84 = arith.subf %33, %83 : vector<4x1xf32>
    %cst_26 = arith.constant 1.000000e+00 : f32
    %85 = vector.broadcast %cst_26 : f32 to vector<4x1xf32>
    %86 = arith.addf %85, %5 : vector<4x1xf32>
    %87 = arith.mulf %84, %86 : vector<4x1xf32>
    %88 = arith.addf %87, %6 : vector<4x1xf32>
    %cst_27 = arith.constant 1.000000e+00 : f32
    %89 = vector.broadcast %cst_27 : f32 to vector<1x256xf32>
    %90 = arith.subf %89, %3 : vector<1x256xf32>
    %91 = vector.broadcast %3 : vector<1x256xf32> to vector<4x256xf32>
    %92 = vector.broadcast %82 : vector<4x1xf32> to vector<4x256xf32>
    %93 = arith.mulf %91, %92 : vector<4x256xf32>
    %94 = vector.broadcast %90 : vector<1x256xf32> to vector<4x256xf32>
    %95 = vector.broadcast %76 : vector<4x1xf32> to vector<4x256xf32>
    %96 = arith.mulf %94, %95 : vector<4x256xf32>
    %97 = arith.addf %93, %96 : vector<4x256xf32>
    %98 = vector.broadcast %3 : vector<1x256xf32> to vector<4x256xf32>
    %99 = vector.broadcast %88 : vector<4x1xf32> to vector<4x256xf32>
    %100 = arith.mulf %98, %99 : vector<4x256xf32>
    %101 = vector.broadcast %90 : vector<1x256xf32> to vector<4x256xf32>
    %102 = vector.broadcast %78 : vector<4x1xf32> to vector<4x256xf32>
    %103 = arith.mulf %101, %102 : vector<4x256xf32>
    %104 = arith.addf %100, %103 : vector<4x256xf32>
    %105 = arith.mulf %1, %97 : vector<4x256xf32>
    %106 = arith.addf %105, %104 : vector<4x256xf32>
    %c0_28 = arith.constant 0 : index
    %c0_29 = arith.constant 0 : index
    %c0_30 = arith.constant 0 : index
    %107 = vector.load %arg5[%c0_28, %c0_29, %c0_30] : memref<1x4x256xf32, #tpu.memory_space<vmem>>, vector<1x4x256xf32>
    %108 = vector.shape_cast %107 : vector<1x4x256xf32> to vector<4x256xf32>
    %109 = vector.shape_cast %106 : vector<4x256xf32> to vector<1x4x256xf32>
    tpu.vector_store %arg5[%c0_28, %c0_29, %c0_30], %109 {strides = array<i32>} : memref<1x4x256xf32, #tpu.memory_space<vmem>>, vector<1x4x256xf32>,
    return
  }
  func.func @transform_0(%arg0: i32, %arg1: i32) -> (i32, i32) {
    %c0_i32 = arith.constant 0 : i32
    %c0_i32_0 = arith.constant 0 : i32
    return %arg1, %c0_i32 : i32, i32
  }
  func.func @transform_1(%arg0: i32, %arg1: i32) -> (i32, i32, i32) {
    %c0_i32 = arith.constant 0 : i32
    %c0_i32_0 = arith.constant 0 : i32
    return %arg0, %arg1, %c0_i32 : i32, i32, i32
  }
  func.func @transform_2(%arg0: i32, %arg1: i32) -> (i32, i32, i32) {
    %c0_i32 = arith.constant 0 : i32
    %c0_i32_0 = arith.constant 0 : i32
    %c0_i32_1 = arith.constant 0 : i32
    return %arg0, %c0_i32, %c0_i32_0 : i32, i32, i32
  }
  func.func @transform_3(%arg0: i32, %arg1: i32) -> (i32, i32, i32) {
    %c0_i32 = arith.constant 0 : i32
    %c0_i32_0 = arith.constant 0 : i32
    return %arg0, %arg1, %c0_i32 : i32, i32, i32
  }
}

</mosaic_0001>

<llo_original>
// kernel: rainv2_forward.1
$region0: #{rainv2_forward.1}
  #allocation0 [shape = 'u32[]', space=smem, size = 0x4, offset = 0x4, fixed_abs, tag = 'smem constant byte address 0x4 - core index']
  #allocation1 [shape = 'u32[144,128]{1,0:T(1,128)}', space=vmem, size = 0x12000, scoped, tag = 'internal scratch']
  %s0 = inlined_call_operand.vmem [shape: f32[4,8], index: 0, kind: input, shape index: {}]
  %s1 = inlined_call_operand.vmem [shape: f32[2,4,256], index: 1, kind: input, shape index: {}]
  %s2 = inlined_call_operand.vmem [shape: f32[2,1,256], index: 2, kind: input, shape index: {}]
  %s3 = inlined_call_operand.vmem [shape: f32[2,4,256], index: 3, kind: output, shape index: {}]
  %s4 = sld [smem:[#allocation0]]
  $region45: #{rainv2_forward.1} parent=0
    _
  %s6 = ssub.s32 1, %s4
  %s7 = scalar_select 0, %s6, %s4
  loop: start=0, step=1, limit=4
  $region2: #{rainv2_forward.1} parent=0 // loop_pre_header
    _
  $region3: #{rainv2_forward.1} parent=0 // loop_header
    %s9 = sphi 0, %s13
    %p10 = scmp.ge.s32.totalorder %s9, 4
    %s16 = sphi 0, %s28
    %s17 = sphi 0, %s24
    %s18 = sphi 0, %s16
    %s19 = sphi 0, %s17
    %s20 = sphi 0, %s18
    %s21 = sphi 0, %s19
    %s31 = sphi 0, %s33
    %s34 = sphi 0, %s31
    %s35 = sphi 0, %s34
    %s51 = sphi 0, %s35
    %s59 = sphi 0, %s61
    %s62 = sphi 0, %s59
    %s63 = sphi 0, %s62
    %s79 = sphi 0, %s63
    %s85 = sphi 0, %s87
    %s88 = sphi 0, %s85
    %s89 = sphi 0, %s88
    %s105 = sphi 0, %s89
    %s113 = sphi 0, %s115
    %s116 = sphi 0, %s113
    %s117 = sphi 0, %s116
    %s133 = sphi 0, %s117
  $region4: #{rainv2_forward.1} parent=0 // loop_header_branch
    %12 = sbr.rel (%p10) target = $region8
  $region5: #{rainv2_forward.1} parent=0 // loop_body
    %s14 = ssub.s32 %s9, 1
    %s15 = ssub.s32 %s9, 2
    %s22 = sadd.s32 1, %s17
    %p23 = scmp.ge.s32.totalorder %s22, 1
    %s24 = scalar_select %p23, 0, %s22
    %s25 = sadd.s32 1, %s16
    %s26 = scalar_select %p23, %s25, %s16
    %p27 = scmp.ge.s32.totalorder %s26, 2
    %s28 = scalar_select %p27, 0, %s26
    %s29 = ssub.s32 %s17, %s24
    %p30 = scmp.eq.s32.totalorder %s29, 0
    %s32 = sadd.s32 %s31, 1
    %s33 = scalar_select %p30, %s31, %s32
    %p36 = pneg %p30
    %p37 = scmp.eq.s32.totalorder %s9, 1
    %p38 = por %p36, %p37
    %p39 = scmp.ne.s32.totalorder %s31, %s34
    %p40 = scmp.eq.s32.totalorder %s9, 0
    %p41 = por %p39, %p40
    %p42 = scmp.ne.s32.totalorder %s31, %s34
    %p43 = scmp.eq.s32.totalorder %s14, 1
    %p44 = por %p42, %p43
    %p45 = scmp.ne.s32.totalorder %s34, %s35
    %p46 = scmp.eq.s32.totalorder %s14, 0
    %p47 = por %p45, %p46
    %p48 = scmp.ne.s32.totalorder %s34, %s35
    %p49 = scmp.eq.s32.totalorder %s15, 1
    %p50 = por %p48, %p49
    %p52 = scmp.ne.s32.totalorder %s35, %s51
    %p53 = scmp.eq.s32.totalorder %s15, 0
    %p54 = por %p52, %p53
    %s55 = ssub.s32 %s16, %s28
    %s56 = ssub.s32 %s17, %s24
    %s57 = sor.u32 %s55, %s56
    %p58 = scmp.eq.s32.totalorder %s57, 0
    %s60 = sadd.s32 %s59, 1
    %s61 = scalar_select %p58, %s59, %s60
    %p64 = pneg %p58
    %p65 = scmp.eq.s32.totalorder %s9, 1
    %p66 = por %p64, %p65
    %p67 = scmp.ne.s32.totalorder %s59, %s62
    %p68 = scmp.eq.s32.totalorder %s9, 0
    %p69 = por %p67, %p68
    %p70 = scmp.ne.s32.totalorder %s59, %s62
    %p71 = scmp.eq.s32.totalorder %s14, 1
    %p72 = por %p70, %p71
    %p73 = scmp.ne.s32.totalorder %s62, %s63
    %p74 = scmp.eq.s32.totalorder %s14, 0
    %p75 = por %p73, %p74
    %p76 = scmp.ne.s32.totalorder %s62, %s63
    %p77 = scmp.eq.s32.totalorder %s15, 1
    %p78 = por %p76, %p77
    %p80 = scmp.ne.s32.totalorder %s63, %s79
    %p81 = scmp.eq.s32.totalorder %s15, 0
    %p82 = por %p80, %p81
    %s83 = ssub.s32 %s16, %s28
    %p84 = scmp.eq.s32.totalorder %s83, 0
    %s86 = sadd.s32 %s85, 1
    %s87 = scalar_select %p84, %s85, %s86
    %p90 = pneg %p84
    %p91 = scmp.eq.s32.totalorder %s9, 1
    %p92 = por %p90, %p91
    %p93 = scmp.ne.s32.totalorder %s85, %s88
    %p94 = scmp.eq.s32.totalorder %s9, 0
    %p95 = por %p93, %p94
    %p96 = scmp.ne.s32.totalorder %s85, %s88
    %p97 = scmp.eq.s32.totalorder %s14, 1
    %p98 = por %p96, %p97
    %p99 = scmp.ne.s32.totalorder %s88, %s89
    %p100 = scmp.eq.s32.totalorder %s14, 0
    %p101 = por %p99, %p100
    %p102 = scmp.ne.s32.totalorder %s88, %s89
    %p103 = scmp.eq.s32.totalorder %s15, 1
    %p104 = por %p102, %p103
    %p106 = scmp.ne.s32.totalorder %s89, %s105
    %p107 = scmp.eq.s32.totalorder %s15, 0
    %p108 = por %p106, %p107
    %s109 = ssub.s32 %s16, %s28
    %s110 = ssub.s32 %s17, %s24
    %s111 = sor.u32 %s109, %s110
    %p112 = scmp.eq.s32.totalorder %s111, 0
    %s114 = sadd.s32 %s113, 1
    %s115 = scalar_select %p112, %s113, %s114
    %p118 = pneg %p112
    %p119 = scmp.eq.s32.totalorder %s9, 1
    %p120 = por %p118, %p119
    %p121 = scmp.ne.s32.totalorder %s113, %s116
    %p122 = scmp.eq.s32.totalorder %s9, 0
    %p123 = por %p121, %p122
    %p124 = scmp.ne.s32.totalorder %s113, %s116
    %p125 = scmp.eq.s32.totalorder %s14, 1
    %p126 = por %p124, %p125
    %p127 = scmp.ne.s32.totalorder %s116, %s117
    %p128 = scmp.eq.s32.totalorder %s14, 0
    %p129 = por %p127, %p128
    %p130 = scmp.ne.s32.totalorder %s116, %s117
    %p131 = scmp.eq.s32.totalorder %s15, 1
    %p132 = por %p130, %p131
    %p134 = scmp.ne.s32.totalorder %s117, %s133
    %p135 = scmp.eq.s32.totalorder %s15, 0
    %p136 = por %p134, %p135
    %p137 = scmp.le.s32.totalorder 1, %s9
    %p138 = scmp.lt.s32.totalorder %s9, 3
    %p139 = pnand %p137, %p138
    %p140 = pneg %p139
    // Predicated region
    $region9: #{rainv2_forward.1} parent=5 // pred_check
      _
    $region10: #{rainv2_forward.1} parent=5 // pred_check_branch
      %142 = sbr.rel (%p139) target = $region12
    $region11: #{rainv2_forward.1} parent=5 // pred_region
      %s143 = ssub.s32 %s9, 1
      // Predicated region
      $region13: #{rainv2_forward.1} parent=11 // pred_check
        %p144 = pneg %p47
      $region14: #{rainv2_forward.1} parent=11 // pred_check_branch
        %146 = sbr.rel (%p144) target = $region16
      $region15: #{rainv2_forward.1} parent=11 // pred_region
        %p147 = scmp.lt.s32.totalorder %s19, 0
        %s148 = scalar_select %p147, %s19, 0
        %s149 = smul.addr %s148, 4
        %s150 = scalar_lea.vmem %s0, %s149
      $region16: #{rainv2_forward.1} parent=11 // pred_fallthru
        _
    $region12: #{rainv2_forward.1} parent=5 // pred_fallthru
      _
    %p151 = scmp.lt.s32.totalorder %s9, 2
    // Predicated region
    $region17: #{rainv2_forward.1} parent=5 // pred_check
      %p152 = pneg %p151
    $region18: #{rainv2_forward.1} parent=5 // pred_check_branch
      %154 = sbr.rel (%p152) target = $region20
    $region19: #{rainv2_forward.1} parent=5 // pred_region
      // Predicated region
      $region21: #{rainv2_forward.1} parent=19 // pred_check
        %p155 = pneg %p69
      $region22: #{rainv2_forward.1} parent=19 // pred_check_branch
        %157 = sbr.rel (%p155) target = $region24
      $region23: #{rainv2_forward.1} parent=19 // pred_region
        %p158 = scmp.lt.s32.totalorder %s16, 1
        %s159 = scalar_select %p158, %s16, 1
        %p160 = scmp.lt.s32.totalorder %s17, 0
        %s161 = scalar_select %p160, %s17, 0
        %s162 = smul.addr %s161, 2
        %s163 = smul.addr %s159, 2
        %s164 = sadd.s32 %s162, %s163
        %s165 = smul.addr %s164, 4
        %s166 = scalar_lea.vmem %s1, %s165
      $region24: #{rainv2_forward.1} parent=19 // pred_fallthru
        _
      // Predicated region
      $region25: #{rainv2_forward.1} parent=19 // pred_check
        %p167 = pneg %p95
      $region26: #{rainv2_forward.1} parent=19 // pred_check_branch
        %169 = sbr.rel (%p167) target = $region28
      $region27: #{rainv2_forward.1} parent=19 // pred_region
        %p170 = scmp.lt.s32.totalorder %s16, 1
        %s171 = scalar_select %p170, %s16, 1
        %s172 = smul.addr %s171, 2
        %s173 = scalar_lea.vmem %s2, %s172
      $region28: #{rainv2_forward.1} parent=19 // pred_fallthru
        _
    $region20: #{rainv2_forward.1} parent=5 // pred_fallthru
      _
    %p174 = scmp.le.s32.totalorder 1, %s9
    %p175 = scmp.lt.s32.totalorder %s9, 3
    %p176 = pnand %p174, %p175
    %p177 = pneg %p176
    // Predicated region
    $region29: #{rainv2_forward.1} parent=5 // pred_check
      _
    $region30: #{rainv2_forward.1} parent=5 // pred_check_branch
      %179 = sbr.rel (%p176) target = $region32
    $region31: #{rainv2_forward.1} parent=5 // pred_region
      %s180 = ssub.s32 %s9, 1
      %p181 = scmp.lt.s32.totalorder %s19, 0
      %s182 = scalar_select %p181, %s19, 0
      %s183 = smul.addr %s182, 4
      %s184 = scalar_lea.vmem %s0, %s183
      %p185 = pneg %p47
      %p186 = pneg %p44
      %p187 = scmp.lt.s32.totalorder %s18, 1
      %s188 = scalar_select %p187, %s18, 1
      %p189 = scmp.lt.s32.totalorder %s19, 0
      %s190 = scalar_select %p189, %s19, 0
      %s191 = smul.addr %s190, 2
      %s192 = smul.addr %s188, 2
      %s193 = sadd.s32 %s191, %s192
      %s194 = smul.addr %s193, 4
      %s195 = scalar_lea.vmem %s1, %s194
      %p196 = pneg %p75
      %p197 = pneg %p72
      %p198 = scmp.lt.s32.totalorder %s18, 1
      %s199 = scalar_select %p198, %s18, 1
      %s200 = smul.addr %s199, 2
      %s201 = scalar_lea.vmem %s2, %s200
      %p202 = pneg %p101
      %p203 = pneg %p98
      %p204 = pneg %p129
      %p205 = pneg %p126
      %p206 = scmp.lt.s32.totalorder %s18, 1
      %s207 = scalar_select %p206, %s18, 1
      %p208 = scmp.lt.s32.totalorder %s19, 0
      %s209 = scalar_select %p208, %s19, 0
      %s210 = smul.addr %s209, 2
      %s211 = smul.addr %s207, 2
      %s212 = sadd.s32 %s210, %s211
      %s213 = smul.addr %s212, 4
      %s214 = scalar_lea.vmem %s3, %s213
      %p215 = scmp.lt.s32.totalorder %s19, 0
      %s216 = scalar_select %p215, %s19, 0
      %s217 = smul.addr %s216, 4
      %s218 = scalar_lea.vmem %s0, %s217
      %p219 = scmp.lt.s32.totalorder %s18, 1
      %s220 = scalar_select %p219, %s18, 1
      %p221 = scmp.lt.s32.totalorder %s19, 0
      %s222 = scalar_select %p221, %s19, 0
      %s223 = smul.addr %s222, 2
      %s224 = smul.addr %s220, 2
      %s225 = sadd.s32 %s223, %s224
      %s226 = smul.addr %s225, 4
      %s227 = scalar_lea.vmem %s1, %s226
      %p228 = scmp.lt.s32.totalorder %s18, 1
      %s229 = scalar_select %p228, %s18, 1
      %s230 = smul.addr %s229, 2
      %s231 = scalar_lea.vmem %s2, %s230
      %p232 = scmp.lt.s32.totalorder %s18, 1
      %s233 = scalar_select %p232, %s18, 1
      %p234 = scmp.lt.s32.totalorder %s19, 0
      %s235 = scalar_select %p234, %s19, 0
      %s236 = smul.addr %s235, 2
      %s237 = smul.addr %s233, 2
      %s238 = sadd.s32 %s236, %s237
      %s239 = smul.addr %s238, 4
      %s240 = scalar_lea.vmem %s3, %s239
      %v241 = vld [vmem:[%s227] sm:$0xff]
      %v242 = vld [vmem:[%s231] sm:$0x3]
      %v243 = vld [vmem:[%s218] sm:$0xf]
      %v244 = vmul.f32 %v241, %v241
      %v246 = vlaneseq
      %v247 = vshrl.u32 %v246, 7
      %v248 = vsub.s32 0, %v247
      %v249 = vrot.slane %v242, %v248
      %v250 = vlaneseq
      %v251 = vshrl.u32 %v250, 7
      %v252 = vsub.s32 1, %v251
      %v253 = vrot.slane %v242, %v252
      %v256 = vcombine.low %v249, %v253
      %v258 = vmul.f32 %v241, %v256
      %v260 = vcombine.high %v258, %v258
      %vm262 = vcmask 1043456
      %v263 = vsel %vm262, %v258, 0.0
      %v264 = vsel %vm262, %v260, 0.0
      %v265 = vadd.f32 %v263, %v264
      %266 = vadd.xlane.f32.xlu0 %v265
      %v267 = vpop.xlane.xlu0 %266
      %v268 = vmul.f32 %v244, %v256
      %v270 = vcombine.high %v268, %v268
      %v272 = vsel %vm262, %v268, 0.0
      %v273 = vsel %vm262, %v270, 0.0
      %v274 = vadd.f32 %v272, %v273
      %275 = vadd.xlane.f32.xlu0 %v274
      %v276 = vpop.xlane.xlu0 %275
      %vm277 = vcmask 1040384
      %v278 = vsel %vm277, %v249, 0.0
      %v279 = vsel %vm277, %v253, 0.0
      %v280 = vadd.f32 %v278, %v279
      %281 = vadd.xlane.f32.xlu0 %v280
      %v282 = vpop.xlane.xlu0 %281
      %v284 = vcombine.high %v241, %v241
      %v286 = vsel %vm262, %v241, 0.0
      %v287 = vsel %vm262, %v284, 0.0
      %v288 = vadd.f32 %v286, %v287
      %289 = vadd.xlane.f32.xlu0 %v288
      %v290 = vpop.xlane.xlu0 %289
      %v292 = vcombine.high %v244, %v244
      %v294 = vsel %vm262, %v244, 0.0
      %v295 = vsel %vm262, %v292, 0.0
      %v296 = vadd.f32 %v294, %v295
      %297 = vadd.xlane.f32.xlu0 %v296
      %v298 = vpop.xlane.xlu0 %297
      %v299 = vsub.f32 %v290, %v267
      %v300 = vsub.f32 %v298, %v276
      %v301 = vsub.f32 256.0, %v282
      %v302 = vadd.f32 %v301, 1e-05
      %v303 = vrcp.pop %v302
      %v304 = vmul.f32 1.0, %v303
      %v305 = vlaneseq
      %v306 = vshrl.u32 %v305, 7
      %v307 = vsub.s32 0, %v306
      %v308 = vrot.slane %v304, %v307
      %v309 = vmul.f32 %v299, %v308
      %v310 = vmul.f32 %v309, 2.0
      %v311 = vmul.f32 %v310, %v299
      %v312 = vsub.f32 %v300, %v311
      %v313 = vmul.f32 %v309, %v309
      %v314 = vlaneseq
      %v315 = vshrl.u32 %v314, 7
      %v316 = vsub.s32 0, %v315
      %v317 = vrot.slane %v301, %v316
      %v318 = vmul.f32 %v313, %v317
      %v319 = vadd.f32 %v312, %v318
      %v320 = vmul.f32 %v319, %v308
      %v321 = vmax.f32 %v320, 0.0
      %v322 = vadd.f32 %v321, 1e-05
      %v323 = vrsqrt.pop %v322
      %v324 = vmul.f32 %v322, %v323
      %vm325 = vcmp.eq.f32.partialorder %v322, inf
      %v326 = vsel %vm325, %v322, %v324
      %vm327 = vcmp.eq.f32.partialorder %v322, 0.0
      %v328 = vand.u32 %v322, 2147483648
      %v329 = vsel %vm327, %v328, %v326
      %v330 = vadd.f32 %v282, 1e-05
      %v331 = vrcp.pop %v330
      %v332 = vmul.f32 1.0, %v331
      %v333 = vlaneseq
      %v334 = vshrl.u32 %v333, 7
      %v335 = vsub.s32 0, %v334
      %v336 = vrot.slane %v332, %v335
      %v337 = vmul.f32 %v267, %v336
      %v338 = vmul.f32 %v337, 2.0
      %v339 = vmul.f32 %v338, %v267
      %v340 = vsub.f32 %v276, %v339
      %v341 = vmul.f32 %v337, %v337
      %v342 = vlaneseq
      %v343 = vshrl.u32 %v342, 7
      %v344 = vsub.s32 0, %v343
      %v345 = vrot.slane %v282, %v344
      %v346 = vmul.f32 %v341, %v345
      %v347 = vadd.f32 %v340, %v346
      %v348 = vmul.f32 %v347, %v336
      %v349 = vmax.f32 %v348, 0.0
      %v350 = vadd.f32 %v349, 1e-05
      %v351 = vrsqrt.pop %v350
      %v352 = vmul.f32 %v350, %v351
      %vm353 = vcmp.eq.f32.partialorder %v350, inf
      %v354 = vsel %vm353, %v350, %v352
      %vm355 = vcmp.eq.f32.partialorder %v350, 0.0
      %v356 = vand.u32 %v350, 2147483648
      %v357 = vsel %vm355, %v356, %v354
      %v358 = vrcp.pop %v329
      %v359 = vmul.f32 1.0, %v358
      %v360 = vrcp.pop %v357
      %v361 = vmul.f32 1.0, %v360
      %v362 = vadd.f32 %v243, 1.0
      %v363 = vmul.f32 %v359, %v362
      %v364 = vmul.f32 %v309, %v363
      %366 = vrot.lane.b32.xlu0 %v364, 1
      %v367 = vpop.permute.xlu0 %366
      %v369 = vsub.f32 %v243, %v367
      %v370 = vmul.f32 %v361, %v329
      %v371 = vmul.f32 %v370, %v362
      %v372 = vmul.f32 %v337, %v370
      %v373 = vsub.f32 %v309, %v372
      %v374 = vmul.f32 %v373, %v362
      %376 = vrot.lane.b32.xlu0 %v243, 127
      %v377 = vpop.permute.xlu0 %376
      %v379 = vadd.f32 %v374, %v377
      %v380 = vsub.f32 1.0, %v242
      %382 = vset.pattern.permute.xlu0 0
      %383 = vperm.xlu0 %382, %v371
      %v384 = vpop.permute.xlu0 %383
      %v386 = vmul.f32 %v249, %v384
      %v387 = vmul.f32 %v253, %v384
      %v389 = vlaneseq
      %v390 = vshrl.u32 %v389, 7
      %v391 = vsub.s32 0, %v390
      %v392 = vrot.slane %v380, %v391
      %v393 = vlaneseq
      %v394 = vshrl.u32 %v393, 7
      %v395 = vsub.s32 1, %v394
      %v396 = vrot.slane %v380, %v395
      %400 = vset.pattern.permute.xlu0 2
      %401 = vperm.xlu0 %400, %v363
      %v402 = vpop.permute.xlu0 %401
      %v404 = vmul.f32 %v392, %v402
      %v405 = vmul.f32 %v396, %v402
      %v406 = vadd.f32 %v386, %v404
      %v407 = vadd.f32 %v387, %v405
      %409 = vset.pattern.permute.xlu0 0
      %410 = vperm.xlu0 %409, %v379
      %v411 = vpop.permute.xlu0 %410
      %v413 = vmul.f32 %v249, %v411
      %v414 = vmul.f32 %v253, %v411
      %416 = vset.pattern.permute.xlu0 3
      %417 = vperm.xlu0 %416, %v369
      %v418 = vpop.permute.xlu0 %417
      %v420 = vmul.f32 %v392, %v418
      %v421 = vmul.f32 %v396, %v418
      %v422 = vadd.f32 %v413, %v420
      %v423 = vadd.f32 %v414, %v421
      %v426 = vcombine.low %v406, %v407
      %v428 = vmul.f32 %v241, %v426
      %v431 = vcombine.low %v422, %v423
      %v433 = vadd.f32 %v428, %v431
      %434 = vst [vmem:[%s240] sm:$0xff] %v433
      %p435 = scmp.lt.s32.totalorder %s18, 1
      %s436 = scalar_select %p435, %s18, 1
      %p437 = scmp.lt.s32.totalorder %s19, 0
      %s438 = scalar_select %p437, %s19, 0
      %s439 = smul.addr %s438, 2
      %s440 = smul.addr %s436, 2
      %s441 = sadd.s32 %s439, %s440
      %s442 = smul.addr %s441, 4
      %s443 = scalar_lea.vmem %s3, %s442
      // Predicated region
      $region33: #{rainv2_forward.1} parent=31 // pred_check
        %p444 = pneg %p126
      $region34: #{rainv2_forward.1} parent=31 // pred_check_branch
        %446 = sbr.rel (%p444) target = $region36
      $region35: #{rainv2_forward.1} parent=31 // pred_region
        _
      $region36: #{rainv2_forward.1} parent=31 // pred_fallthru
        _
    $region32: #{rainv2_forward.1} parent=5 // pred_fallthru
      _
    %p447 = scmp.le.s32.totalorder 2, %s9
    // Predicated region
    $region37: #{rainv2_forward.1} parent=5 // pred_check
      %p448 = pneg %p447
    $region38: #{rainv2_forward.1} parent=5 // pred_check_branch
      %450 = sbr.rel (%p448) target = $region40
    $region39: #{rainv2_forward.1} parent=5 // pred_region
      %s451 = ssub.s32 %s9, 2
      // Predicated region
      $region41: #{rainv2_forward.1} parent=39 // pred_check
        %p452 = pneg %p132
      $region42: #{rainv2_forward.1} parent=39 // pred_check_branch
        %454 = sbr.rel (%p452) target = $region44
      $region43: #{rainv2_forward.1} parent=39 // pred_region
        %p455 = scmp.lt.s32.totalorder %s20, 1
        %s456 = scalar_select %p455, %s20, 1
        %p457 = scmp.lt.s32.totalorder %s21, 0
        %s458 = scalar_select %p457, %s21, 0
        %s459 = smul.addr %s458, 2
        %s460 = smul.addr %s456, 2
        %s461 = sadd.s32 %s459, %s460
        %s462 = smul.addr %s461, 4
        %s463 = scalar_lea.vmem %s3, %s462
      $region44: #{rainv2_forward.1} parent=39 // pred_fallthru
        _
    $region40: #{rainv2_forward.1} parent=5 // pred_fallthru
      _
  $region6: #{rainv2_forward.1} parent=0 // loop_footer
    %s13 = sadd.s32 1, %s9
  $region7: #{rainv2_forward.1} parent=0 // loop_footer_branch
    %8 = sbr.rel target = $region3
  $region8: #{rainv2_forward.1} parent=0 // loop_exit
    _

</llo_original>
